<compile_context>
chip_gen: v7x
topology: tpu7x:2x2x1
jax: 0.10.0
libtpu: 0.0.40
codegen_flags: <defaults>
</compile_context>

<pallas_src>
import math
from typing import NamedTuple

import jax
import jax.numpy as jnp
from jax.experimental import pallas as pl
from jax.experimental.pallas import tpu as pltpu


def _round_up(x: int, m: int) -> int:
    return ((x + m - 1) // m) * m


# Conservative double-buffered VMEM working-set budget: fits v7x (64 MiB
# physical / 32 MiB default scoped) with headroom; v5e/v6e have 128 MiB.
_VMEM_BUDGET = 32 << 20
_VMEM_LIMIT_CAP = 48 << 20


def _vmem_bytes(tm: int, tn: int, tk: int) -> int:
    # double-buffered bf16 x/w tiles + f32 shift row + double-buffered f32 out.
    return 2 * (tm * tk * 2 + tk * tn * 2 + tn * 4) + 2 * (tm * tn * 4)


def _lane_tile(dim: int, target: int) -> int:
    """Pick a lane-dim tile: single (128-aligned) tile when the padded dim is
    moderate (minimal padding), else a 256-aligned target (full MXU columns on
    v6e/v7x's 2x256x256 MXU; also fine for v5e's 128x128 MXUs)."""
    padded = _round_up(dim, 128)
    if padded <= target or padded <= 1024:
        return padded
    return _round_up(target, 256)


class DensePlan(NamedTuple):
    M: int
    K: int
    N: int
    Mp: int
    Kp: int
    Np: int
    tm: int
    tn: int
    tk: int
    activation: str
    vmem_limit: int


def plan_dense(batch, in_features, out_features, activation="none",
               tm=512, tn=512, tk=512) -> DensePlan:
    """Choose tile sizes / padded dims once for a given layer + batch size."""
    M, K, N = batch, in_features, out_features

    tm_ = min(_round_up(tm, 16), _round_up(M, 16))
    tk_ = _lane_tile(K, tk)
    if activation == "softmax":
        # Softmax reduces over the full row -> single block along N; cap tm so
        # the (tm, Np) f32 output block stays within the v7x VMEM budget.
        tn_ = _round_up(N, 128)
        tm_ = min(tm_, 128)
    else:
        tn_ = _lane_tile(N, tn)

    # Shrink tk (then tm) until the double-buffered working set fits the budget.
    while _vmem_bytes(tm_, tn_, tk_) > _VMEM_BUDGET and tk_ > 128:
        tk_ = max(128, (tk_ // 2) // 128 * 128)
    while _vmem_bytes(tm_, tn_, tk_) > _VMEM_BUDGET and tm_ > 16:
        tm_ = max(16, (tm_ // 2) // 16 * 16)

    Mp, Np, Kp = _round_up(M, tm_), _round_up(N, tn_), _round_up(K, tk_)
    need = _vmem_bytes(tm_, tn_, tk_)
    vmem_limit = min(max(need + (8 << 20), 32 << 20), _VMEM_LIMIT_CAP)
    return DensePlan(M, K, N, Mp, Kp, Np, tm_, tn_, tk_, activation, vmem_limit)


def prepare_dense_params(plan: DensePlan, w_t, b, bn_scale, bn_shift):
    """ONE-TIME parameter prep (do at init, not per forward call):
      (x @ W + b) * scale + shift  ==  x @ (W * scale) + (b * scale + shift)
    Weight is folded, cast to bf16 and padded to the tile grid here so the
    forward pass never re-reads / re-writes the full weight matrix in HBM."""
    K, N, Kp, Np = plan.K, plan.N, plan.Kp, plan.Np
    w_eff = (w_t * bn_scale).astype(jnp.float32)
    shift_eff = (b * bn_scale + bn_shift).astype(jnp.float32)

    w_p = jnp.pad(w_eff.astype(jnp.bfloat16), ((0, Kp - K), (0, Np - N)))
    # Padded output columns must not pollute the softmax denominator.
    pad_fill = -1e30 if plan.activation == "softmax" else 0.0
    shift_p = jnp.pad(shift_eff, ((0, 0), (0, Np - N)), constant_values=pad_fill)
    return w_p, shift_p


def _make_kernel(activation: str):
    def dense_kernel(x_ref, w_ref, shift_ref, o_ref):
        k = pl.program_id(2)

        # MXU matmul on bf16 tiles, f32 accumulate directly into the resident
        # output block (its index_map ignores k): no scratch, no final copy,
        # no zero-init pass (first K step assigns).
        part = jnp.dot(x_ref[...], w_ref[...], preferred_element_type=jnp.float32)

        @pl.when(k == 0)
        def _():
            o_ref[...] = part

        @pl.when(k > 0)
        def _():
            o_ref[...] += part

        @pl.when(k == pl.num_programs(2) - 1)
        def _():
            # Folded bias + BN shift, then activation, applied in place.
            y = o_ref[...] + shift_ref[...]
            if activation == "tanh":
                y = jnp.tanh(y)
            elif activation == "sigmoid":
                y = jax.nn.sigmoid(y)
            elif activation == "relu":
                y = jnp.maximum(y, 0.0)
            elif activation == "softmax":
                # nn.Softmax() for 2-D input -> softmax over the last dim.
                # (full padded row is guaranteed to be in this block)
                m = jnp.max(y, axis=-1, keepdims=True)
                e = jnp.exp(y - m)
                y = e * pl.reciprocal(
                    jnp.sum(e, axis=-1, keepdims=True), approx=True
                )
            # 'none' -> identity
            o_ref[...] = y

    return dense_kernel


def dense_forward(plan: DensePlan, w_p, shift_p, x):
    """x: (M, K) f32; w_p/shift_p from prepare_dense_params(plan, ...)."""
    M, K, N = plan.M, plan.K, plan.N
    assert x.shape == (M, K)
    tm, tn, tk = plan.tm, plan.tn, plan.tk
    Mp, Np, Kp = plan.Mp, plan.Np, plan.Kp

    # Per-call work: only the activation tensor is cast/padded.
    x_p = jnp.pad(x.astype(jnp.bfloat16), ((0, Mp - M), (0, Kp - K)))

    grid = (Mp // tm, Np // tn, Kp // tk)
    transcendental = plan.activation in ("tanh", "sigmoid", "softmax")

    out_p = pl.pallas_call(
        _make_kernel(plan.activation),
        out_shape=jax.ShapeDtypeStruct((Mp, Np), jnp.float32),
        grid=grid,
        in_specs=[
            pl.BlockSpec((tm, tk), lambda i, j, k: (i, k)),
            pl.BlockSpec((tk, tn), lambda i, j, k: (k, j)),
            pl.BlockSpec((1, tn), lambda i, j, k: (0, j)),
        ],
        out_specs=pl.BlockSpec((tm, tn), lambda i, j, k: (i, j)),
        compiler_params=pltpu.CompilerParams(
            dimension_semantics=("parallel", "parallel", "arbitrary"),
            vmem_limit_bytes=plan.vmem_limit,
        ),
        cost_estimate=pl.CostEstimate(
            flops=2 * Mp * Np * Kp,
            transcendentals=Mp * Np if transcendental else 0,
            # Truthful HBM traffic: operands are re-streamed across the grid.
            bytes_accessed=(
                x_p.size * 2 * (Np // tn)        # x re-read per N tile
                + w_p.size * 2 * (Mp // tm)      # W re-read per M tile
                + shift_p.size * 4 * (Mp // tm)
                + Mp * Np * 4                    # output written once
            ),
        ),
    )(x_p, w_p, shift_p)

    return out_p[:M, :N]


def init_dense_params(key, in_features, out_features, bn=False):
    """Deterministic init matching the PyTorch module's __init__ (eval mode)."""
    kw, kb = jax.random.split(key)
    # fc.weight ~ Normal(0, sqrt(1/out_features)), torch shape (out_f, in_f);
    # stored transposed (in_f, out_f).
    w = jax.random.normal(kw, (out_features, in_features), jnp.float32) * math.sqrt(
        1.0 / out_features
    )
    w_t = w.T
    # fc.bias ~ Uniform(-1/sqrt(in_f), 1/sqrt(in_f)) (PyTorch Linear default).
    bound = 1.0 / math.sqrt(in_features)
    b = jax.random.uniform(
        kb, (1, out_features), jnp.float32, minval=-bound, maxval=bound
    )
    if bn:
        # BatchNorm1d eval mode with weight=1, bias=0, running_mean=0, var=1.
        eps = 1e-5
        gamma = jnp.ones((1, out_features), jnp.float32)
        beta = jnp.zeros((1, out_features), jnp.float32)
        running_mean = jnp.zeros((1, out_features), jnp.float32)
        running_var = jnp.ones((1, out_features), jnp.float32)
        scale = gamma / jnp.sqrt(running_var + eps)
        shift = beta - running_mean * scale
    else:
        scale = jnp.ones((1, out_features), jnp.float32)
        shift = jnp.zeros((1, out_features), jnp.float32)
    return w_t, b, scale, shift


def _reference(x, w_t, b, scale, shift, activation):
    y = (x @ w_t + b) * scale + shift
    if activation == "tanh":
        y = jnp.tanh(y)
    elif activation == "sigmoid":
        y = jax.nn.sigmoid(y)
    elif activation == "relu":
        y = jnp.maximum(y, 0.0)
    elif activation == "softmax":
        y = jax.nn.softmax(y, axis=-1)
    return y


if __name__ == "__main__":
    key = jax.random.PRNGKey(0)
    k_x, k_p1, k_p2 = jax.random.split(key, 3)

    # Case 1: relu + BN (eval), lane-aligned out_features.
    batch, in_features, out_features = 8, 32, 128
    x = jax.random.normal(k_x, (batch, in_features), jnp.float32)
    w_t, b, sc, sh = init_dense_params(k_p1, in_features, out_features, bn=True)

    plan1 = plan_dense(batch, in_features, out_features, activation="relu")
    w_p1, shift_p1 = prepare_dense_params(plan1, w_t, b, sc, sh)  # one-time prep
    out = jax.block_until_ready(dense_forward(plan1, w_p1, shift_p1, x))
    ref = _reference(x, w_t, b, sc, sh, "relu")
    assert out.shape == (batch, out_features)
    assert jnp.allclose(out, ref, atol=2e-2, rtol=2e-2), float(
        jnp.max(jnp.abs(out - ref))
    )

    # Case 2: softmax with out_features NOT a multiple of 128 (exercises the
    # padding mask and the full-row softmax block).
    out_features2 = 96
    w_t2, b2, sc2, sh2 = init_dense_params(k_p2, in_features, out_features2, bn=False)
    plan2 = plan_dense(batch, in_features, out_features2, activation="softmax")
    w_p2, shift_p2 = prepare_dense_params(plan2, w_t2, b2, sc2, sh2)
    out2 = jax.block_until_ready(dense_forward(plan2, w_p2, shift_p2, x))
    ref2 = _reference(x, w_t2, b2, sc2, sh2, "softmax")
    assert out2.shape == (batch, out_features2)
    assert jnp.allclose(out2, ref2, atol=2e-2, rtol=2e-2), float(
        jnp.max(jnp.abs(out2 - ref2))
    )
    assert jnp.allclose(out2.sum(axis=-1), 1.0, atol=2e-2)

    print("KERNEL_OK")
</pallas_src>

<mosaic_0001>
module attributes {stable_mosaic.version = 11 : i64} {
  func.func @dense_kernel(%arg0: i32, %arg1: i32, %arg2: i32, %arg3: memref<16x128xbf16, #tpu.memory_space<vmem>>, %arg4: memref<128x128xbf16, #tpu.memory_space<vmem>>, %arg5: memref<1x128xf32, #tpu.memory_space<vmem>>, %arg6: memref<16x128xf32, #tpu.memory_space<vmem>>) attributes {dimension_semantics = [#tpu.dimension_semantics<parallel>, #tpu.dimension_semantics<parallel>, #tpu.dimension_semantics<arbitrary>], iteration_bounds = array<i64: 1, 1, 1>, scalar_prefetch = 0 : i64, scratch_operands = 0 : i64, tpu.core_type = #tpu.core_type<tc>, window_params = [{transform_indices = @transform_0, window_bounds = array<i64: 16, 128>}, {transform_indices = @transform_1, window_bounds = array<i64: 128, 128>}, {transform_indices = @transform_2, window_bounds = array<i64: 1, 128>}, {transform_indices = @transform_3, window_bounds = array<i64: 16, 128>}]} {
    %c0 = arith.constant 0 : index
    %c0_0 = arith.constant 0 : index
    %0 = vector.load %arg3[%c0, %c0_0] : memref<16x128xbf16, #tpu.memory_space<vmem>>, vector<16x128xbf16>
    %c0_1 = arith.constant 0 : index
    %c0_2 = arith.constant 0 : index
    %1 = vector.load %arg4[%c0_1, %c0_2] : memref<128x128xbf16, #tpu.memory_space<vmem>>, vector<128x128xbf16>
    %cst = arith.constant dense<0.000000e+00> : vector<16x128xf32>
    %2 = tpu.matmul %0, %1, %cst {dimension_numbers = #tpu.dot_dimension_numbers<[1], [0], [0], [1], [0, 0, 1, 1], [], []>} : vector<16x128xbf16>, vector<128x128xbf16>, vector<16x128xf32> -> vector<16x128xf32>
    %c0_i32 = arith.constant 0 : i32
    %3 = arith.cmpi eq, %arg2, %c0_i32 : i32
    %4 = arith.extui %3 : i1 to i32
    %c0_i32_3 = arith.constant 0 : i32
    %5 = arith.cmpi ne, %4, %c0_i32_3 : i32
    scf.if %5 {
      %c0_8 = arith.constant 0 : index
      %c0_9 = arith.constant 0 : index
      %12 = vector.load %arg6[%c0_8, %c0_9] : memref<16x128xf32, #tpu.memory_space<vmem>>, vector<16x128xf32>
      tpu.vector_store %arg6[%c0_8, %c0_9], %2 {strides = array<i32>} : memref<16x128xf32, #tpu.memory_space<vmem>>, vector<16x128xf32>,
    } else {
    }
    %c0_i32_4 = arith.constant 0 : i32
    %6 = arith.cmpi sgt, %arg2, %c0_i32_4 : i32
    %7 = arith.extui %6 : i1 to i32
    %c0_i32_5 = arith.constant 0 : i32
    %8 = arith.cmpi ne, %7, %c0_i32_5 : i32
    scf.if %8 {
      %c0_8 = arith.constant 0 : index
      %c0_9 = arith.constant 0 : index
      %12 = vector.load %arg6[%c0_8, %c0_9] : memref<16x128xf32, #tpu.memory_space<vmem>>, vector<16x128xf32>
      %13 = arith.addf %12, %2 : vector<16x128xf32>
      %c0_10 = arith.constant 0 : index
      %c0_11 = arith.constant 0 : index
      %14 = vector.load %arg6[%c0_10, %c0_11] : memref<16x128xf32, #tpu.memory_space<vmem>>, vector<16x128xf32>
      tpu.vector_store %arg6[%c0_10, %c0_11], %13 {strides = array<i32>} : memref<16x128xf32, #tpu.memory_space<vmem>>, vector<16x128xf32>,
    } else {
    }
    %c0_i32_6 = arith.constant 0 : i32
    %9 = arith.cmpi eq, %arg2, %c0_i32_6 : i32
    %10 = arith.extui %9 : i1 to i32
    %c0_i32_7 = arith.constant 0 : i32
    %11 = arith.cmpi ne, %10, %c0_i32_7 : i32
    scf.if %11 {
      %c0_8 = arith.constant 0 : index
      %c0_9 = arith.constant 0 : index
      %12 = vector.load %arg6[%c0_8, %c0_9] : memref<16x128xf32, #tpu.memory_space<vmem>>, vector<16x128xf32>
      %c0_10 = arith.constant 0 : index
      %c0_11 = arith.constant 0 : index
      %13 = vector.load %arg5[%c0_10, %c0_11] : memref<1x128xf32, #tpu.memory_space<vmem>>, vector<1x128xf32>
      %14 = vector.broadcast %13 : vector<1x128xf32> to vector<16x128xf32>
      %15 = arith.addf %12, %14 : vector<16x128xf32>
      %cst_12 = arith.constant 0.000000e+00 : f32
      %16 = vector.broadcast %cst_12 : f32 to vector<16x128xf32>
      %17 = arith.maximumf %15, %16 : vector<16x128xf32>
      %c0_13 = arith.constant 0 : index
      %c0_14 = arith.constant 0 : index
      %18 = vector.load %arg6[%c0_13, %c0_14] : memref<16x128xf32, #tpu.memory_space<vmem>>, vector<16x128xf32>
      tpu.vector_store %arg6[%c0_13, %c0_14], %17 {strides = array<i32>} : memref<16x128xf32, #tpu.memory_space<vmem>>, vector<16x128xf32>,
    } else {
    }
    return
  }
  func.func @transform_0(%arg0: i32, %arg1: i32, %arg2: i32) -> (i32, i32) {
    %c0_i32 = arith.constant 0 : i32
    return %arg0, %arg2 : i32, i32
  }
  func.func @transform_1(%arg0: i32, %arg1: i32, %arg2: i32) -> (i32, i32) {
    %c0_i32 = arith.constant 0 : i32
    return %arg2, %arg1 : i32, i32
  }
  func.func @transform_2(%arg0: i32, %arg1: i32, %arg2: i32) -> (i32, i32) {
    %c0_i32 = arith.constant 0 : i32
    %c0_i32_0 = arith.constant 0 : i32
    return %c0_i32, %arg1 : i32, i32
  }
  func.func @transform_3(%arg0: i32, %arg1: i32, %arg2: i32) -> (i32, i32) {
    %c0_i32 = arith.constant 0 : i32
    return %arg0, %arg1 : i32, i32
  }
}

</mosaic_0001>

<llo_original>
// kernel: tpu_custom_call.1
$region0: #{tpu_custom_call.1}
  #allocation0 [shape = 'u32[]', space=smem, size = 0x4, offset = 0x4, fixed_abs, tag = 'smem constant byte address 0x4 - core index']
  #allocation1 [shape = 'u32[144,128]{1,0:T(1,128)}', space=vmem, size = 0x12000, scoped, tag = 'internal scratch']
  %s0 = inlined_call_operand.hbm [shape: bf16[16,128], index: 0, kind: input, shape index: {}]
  %s1 = inlined_call_operand.hbm [shape: bf16[128,128], index: 1, kind: input, shape index: {}]
  %s2 = inlined_call_operand.vmem [shape: f32[1,128], index: 2, kind: input, shape index: {}]
  %s3 = inlined_call_operand.hbm [shape: f32[16,128], index: 3, kind: output, shape index: {}]
  %s4 = sld [smem:[#allocation0]]
  $region42: #{tpu_custom_call.1} parent=0
    _
  %s6 = ssub.s32 1, %s4
  %s7 = scalar_select 0, %s6, %s4
  $region1: #{tpu_custom_call.1} parent=0
    #allocation2 [shape = 'u8[4096]{0}', space=vmem, size = 0x1000, scoped, tag = 'input window, operand 0, single buffered']
    #allocation3 [shape = 's32[1]{0}', space=sflag, size = 0x4, scoped, tag = 'scoped memory for tpu_custom_call.1']
    #allocation4 [shape = 's32[1]{0}', space=sflag, size = 0x4, scoped, tag = 'scoped memory for tpu_custom_call.1']
    #allocation5 [shape = 'u8[32768]{0}', space=vmem, size = 0x8000, scoped, tag = 'input window, operand 1, single buffered']
    #allocation6 [shape = 's32[1]{0}', space=sflag, size = 0x4, scoped, tag = 'scoped memory for tpu_custom_call.1']
    #allocation7 [shape = 'u8[8192]{0}', space=vmem, size = 0x2000, scoped, tag = 'output window, operand 0, single buffered']
    %8 = vsyncpa [#allocation3], 0
    %9 = vsyncpa [#allocation6], 0
    %10 = vsyncpa [#allocation4], 0
    // Predicated region
    $region2: #{tpu_custom_call.1} parent=1 // pred_check
      _
    $region3: #{tpu_custom_call.1} parent=1 // pred_check_branch
      %12 = sbr.rel (0) target = $region5
    $region4: #{tpu_custom_call.1} parent=1 // pred_region
      %s14 = ssub.s32 128, 128
      %15 = vsyncadd [#allocation3], %s14
      %s16 = sshll.u32 [#allocation2], 4
      %s17 = int_to_ptr.vmem [resolvable:$true] %s16
      %22 = dma.hbm_to_vmem [thread:$0]  %s0, 128, %s17, [#allocation3], 64, 64, 4
    $region5: #{tpu_custom_call.1} parent=1 // pred_fallthru
      _
    // Predicated region
    $region6: #{tpu_custom_call.1} parent=1 // pred_check
      _
    $region7: #{tpu_custom_call.1} parent=1 // pred_check_branch
      %24 = sbr.rel (0) target = $region9
    $region8: #{tpu_custom_call.1} parent=1 // pred_region
      %s26 = ssub.s32 1024, 1024
      %27 = vsyncadd [#allocation6], %s26
      %s28 = sshll.u32 [#allocation5], 4
      %s29 = int_to_ptr.vmem [resolvable:$true] %s28
      %34 = dma.hbm_to_vmem [thread:$0]  %s1, 1024, %s29, [#allocation6], 64, 64, 4
    $region9: #{tpu_custom_call.1} parent=1 // pred_fallthru
      _
    // Predicated region
    $region10: #{tpu_custom_call.1} parent=1 // pred_check
      _
    $region11: #{tpu_custom_call.1} parent=1 // pred_check_branch
      %36 = sbr.rel (0) target = $region13
    $region12: #{tpu_custom_call.1} parent=1 // pred_region
      _
    $region13: #{tpu_custom_call.1} parent=1 // pred_fallthru
      _
    // Predicated region
    $region14: #{tpu_custom_call.1} parent=1 // pred_check
      _
    $region15: #{tpu_custom_call.1} parent=1 // pred_check_branch
      %38 = sbr.rel (0) target = $region17
    $region16: #{tpu_custom_call.1} parent=1 // pred_region
      %39 = dma.done [#allocation3], 128
    $region17: #{tpu_custom_call.1} parent=1 // pred_fallthru
      _
    // Predicated region
    $region18: #{tpu_custom_call.1} parent=1 // pred_check
      _
    $region19: #{tpu_custom_call.1} parent=1 // pred_check_branch
      %41 = sbr.rel (0) target = $region21
    $region20: #{tpu_custom_call.1} parent=1 // pred_region
      %42 = dma.done [#allocation6], 1024
    $region21: #{tpu_custom_call.1} parent=1 // pred_fallthru
      _
    %v44 = vld [vmem:[#allocation2] sm:$0xf]
    %v45 = vld [vmem:[#allocation2 + $0x4] sm:$0xf]
    %v46 = vld [vmem:[#allocation5] sm:$0xf]
    %v47 = vld [vmem:[#allocation5 + $0x4] sm:$0xf]
    %v48 = vld [vmem:[#allocation5 + $0x8] sm:$0xf]
    %v49 = vld [vmem:[#allocation5 + $0xc] sm:$0xf]
    %v50 = vld [vmem:[#allocation5 + $0x10] sm:$0xf]
    %v51 = vld [vmem:[#allocation5 + $0x14] sm:$0xf]
    %v52 = vld [vmem:[#allocation5 + $0x18] sm:$0xf]
    %v53 = vld [vmem:[#allocation5 + $0x1c] sm:$0xf]
    %v54 = vld [vmem:[#allocation5 + $0x20] sm:$0xf]
    %v55 = vld [vmem:[#allocation5 + $0x24] sm:$0xf]
    %v56 = vld [vmem:[#allocation5 + $0x28] sm:$0xf]
    %v57 = vld [vmem:[#allocation5 + $0x2c] sm:$0xf]
    %v58 = vld [vmem:[#allocation5 + $0x30] sm:$0xf]
    %v59 = vld [vmem:[#allocation5 + $0x34] sm:$0xf]
    %v60 = vld [vmem:[#allocation5 + $0x38] sm:$0xf]
    %v61 = vld [vmem:[#allocation5 + $0x3c] sm:$0xf]
    %v64 = vunpack.c.l.b16 %v44
    %v65 = vunpack.c.l.b16 %v45
    %v66 = vpack.c.b16 %v65, %v64
    %v84 = vunpack.c.l.b16 %v46
    %v85 = vunpack.c.l.b16 %v47
    %v86 = vunpack.c.l.b16 %v48
    %v87 = vunpack.c.l.b16 %v49
    %v88 = vunpack.c.l.b16 %v50
    %v89 = vunpack.c.l.b16 %v51
    %v90 = vunpack.c.l.b16 %v52
    %v91 = vunpack.c.l.b16 %v53
    %v92 = vunpack.c.l.b16 %v54
    %v93 = vunpack.c.l.b16 %v55
    %v94 = vunpack.c.l.b16 %v56
    %v95 = vunpack.c.l.b16 %v57
    %v96 = vunpack.c.l.b16 %v58
    %v97 = vunpack.c.l.b16 %v59
    %v98 = vunpack.c.l.b16 %v60
    %v99 = vunpack.c.l.b16 %v61
    %v100 = vpack.c.b16 %v85, %v84
    %v101 = vpack.c.b16 %v87, %v86
    %v102 = vpack.c.b16 %v89, %v88
    %v103 = vpack.c.b16 %v91, %v90
    %v104 = vpack.c.b16 %v93, %v92
    %v105 = vpack.c.b16 %v95, %v94
    %v106 = vpack.c.b16 %v97, %v96
    %v107 = vpack.c.b16 %v99, %v98
    %116 = vmatprep.subr.bf16.mxu0 0
    %117 = vmatpush1.bf16.msra.mxu0 %v100
    %118 = vmatprep.subr.bf16.mxu0 0
    %119 = vmatpush1.bf16.msra.mxu0 %v101
    %120 = vmatprep.subr.bf16.mxu0 0
    %121 = vmatpush1.bf16.msra.mxu0 %v102
    %122 = vmatprep.subr.bf16.mxu0 0
    %123 = vmatpush1.bf16.msra.mxu0 %v103
    %124 = vmatprep.subr.bf16.mxu0 0
    %125 = vmatpush1.bf16.msra.mxu0 %v104
    %126 = vmatprep.subr.bf16.mxu0 0
    %127 = vmatpush1.bf16.msra.mxu0 %v105
    %128 = vmatprep.subr.bf16.mxu0 0
    %129 = vmatpush1.bf16.msra.mxu0 %v106
    %130 = vmatprep.subr.bf16.mxu0 0
    %131 = vmatpush1.bf16.msra.mxu0 %v107
    %132 = vmatprep.subr.bf16.mxu0 0
    %133 = vmatpush1.bf16.msra.mxu0 0
    %134 = vmatprep.subr.bf16.mxu0 0
    %135 = vmatpush1.bf16.msra.mxu0 0
    %136 = vmatprep.subr.bf16.mxu0 0
    %137 = vmatpush1.bf16.msra.mxu0 0
    %138 = vmatprep.subr.bf16.mxu0 0
    %139 = vmatpush1.bf16.msra.mxu0 0
    %140 = vmatprep.subr.bf16.mxu0 0
    %141 = vmatpush1.bf16.msra.mxu0 0
    %142 = vmatprep.subr.bf16.mxu0 0
    %143 = vmatpush1.bf16.msra.mxu0 0
    %144 = vmatprep.subr.bf16.mxu0 0
    %145 = vmatpush1.bf16.msra.mxu0 0
    %146 = vmatprep.subr.bf16.mxu0 0
    %147 = vmatpush1.bf16.msra.mxu0 0
    %148 = vmatprep.mubr.bf16.mxu0 0
    %149 = vmatmul.mubr.bf16.gmra.mrb[0].mxu0 %v66
    %v150 = vpop.f32.mrb[0].mxu0
    %v151 = vadd.f32 0.0, %v150
    %v152 = vpop.f32.mrb[0].mxu0
    %v153 = vpop.f32.mrb[0].mxu0
    %v154 = vadd.f32 0.0, %v153
    %v155 = vpop.f32.mrb[0].mxu0
    %156 = vdwg.mxu0
    %p157 = scmp.eq.s32.totalorder 0, 0
    // Predicated region
    $region22: #{tpu_custom_call.1} parent=1 // pred_check
      %p158 = pneg %p157
    $region23: #{tpu_custom_call.1} parent=1 // pred_check_branch
      %160 = sbr.rel (%p158) target = $region25
    $region24: #{tpu_custom_call.1} parent=1 // pred_region
      %161 = vst [vmem:[#allocation7] sm:$0xff] %v151
      %162 = vst [vmem:[#allocation7 + $0x8] sm:$0xff] %v154
    $region25: #{tpu_custom_call.1} parent=1 // pred_fallthru
      _
    %p163 = scmp.gt.s32.totalorder 0, 0
    // Predicated region
    $region26: #{tpu_custom_call.1} parent=1 // pred_check
      %p164 = pneg %p163
    $region27: #{tpu_custom_call.1} parent=1 // pred_check_branch
      %166 = sbr.rel (%p164) target = $region29
    $region28: #{tpu_custom_call.1} parent=1 // pred_region
      %v167 = vld [vmem:[#allocation7] sm:$0xff]
      %v168 = vld [vmem:[#allocation7 + $0x8] sm:$0xff]
      %v169 = vadd.f32 %v167, %v151
      %v170 = vadd.f32 %v168, %v154
      %171 = vst [vmem:[#allocation7] sm:$0xff] %v169
      %172 = vst [vmem:[#allocation7 + $0x8] sm:$0xff] %v170
    $region29: #{tpu_custom_call.1} parent=1 // pred_fallthru
      _
    // Predicated region
    $region30: #{tpu_custom_call.1} parent=1 // pred_check
      %p173 = pneg %p157
    $region31: #{tpu_custom_call.1} parent=1 // pred_check_branch
      %175 = sbr.rel (%p173) target = $region33
    $region32: #{tpu_custom_call.1} parent=1 // pred_region
      %v176 = vld [vmem:[#allocation7] sm:$0xff]
      %v177 = vld [vmem:[#allocation7 + $0x8] sm:$0xff]
      %v178 = vld [vmem:[%s2] sm:$0x1]
      %v180 = vlaneseq
      %v181 = vshrl.u32 %v180, 7
      %v182 = vsub.s32 0, %v181
      %v183 = vrot.slane %v178, %v182
      %v185 = vadd.f32 %v176, %v183
      %v186 = vadd.f32 %v177, %v183
      %v187 = vmax.f32 %v185, 0.0
      %v188 = vmax.f32 %v186, 0.0
      %189 = vst [vmem:[#allocation7] sm:$0xff] %v187
      %190 = vst [vmem:[#allocation7 + $0x8] sm:$0xff] %v188
    $region33: #{tpu_custom_call.1} parent=1 // pred_fallthru
      _
    // Predicated region
    $region34: #{tpu_custom_call.1} parent=1 // pred_check
      _
    $region35: #{tpu_custom_call.1} parent=1 // pred_check_branch
      %192 = sbr.rel (0) target = $region37
    $region36: #{tpu_custom_call.1} parent=1 // pred_region
      %s194 = ssub.s32 256, 256
      %195 = vsyncadd [#allocation4], %s194
      %s196 = sshll.u32 [#allocation7], 4
      %s197 = int_to_ptr.vmem [resolvable:$true] %s196
      %202 = dma.vmem_to_hbm [thread:$0]  %s197, 256, %s3, [#allocation4], 128, 128, 8
    $region37: #{tpu_custom_call.1} parent=1 // pred_fallthru
      _
    // Predicated region
    $region38: #{tpu_custom_call.1} parent=1 // pred_check
      _
    $region39: #{tpu_custom_call.1} parent=1 // pred_check_branch
      %204 = sbr.rel (0) target = $region41
    $region40: #{tpu_custom_call.1} parent=1 // pred_region
      %205 = dma.done [#allocation4], 256
    $region41: #{tpu_custom_call.1} parent=1 // pred_fallthru
      _
    %206 = vsyncpa [#allocation3], 1
    %207 = vsyncpa [#allocation6], 1
    %208 = vsyncpa [#allocation4], 1

</llo_original>
